<compile_context>
chip_gen: v7x
topology: tpu7x:2x2x1
jax: 0.10.0
libtpu: 0.0.40
codegen_flags: <defaults>
</compile_context>

<pallas_src>
import math
import functools

import jax
import jax.numpy as jnp
from jax.experimental import pallas as pl
from jax.experimental.pallas import tpu as pltpu


# --------------------------------------------------------------------------
# Kernels
# --------------------------------------------------------------------------
def _pe_add_kernel(x_ref, pe_ref, o_ref, *, batch):
    # x_ref/o_ref: (ts, B*D); pe_ref: (ts, D). Broadcast pe over batch along lanes.
    pe = pe_ref[...]
    if batch > 1:
        pe = jnp.concatenate([pe] * batch, axis=-1)
    o_ref[...] = (x_ref[...] + pe).astype(o_ref.dtype)


def _pe_add_dropout_kernel(x_ref, pe_ref, bits_ref, o_ref, *, batch, keep_threshold, scale):
    # Inverted dropout, fused with the positional add.
    # keep iff bits >= keep_threshold  =>  P(keep) = 1 - p  (bits ~ U[0, 2^32)).
    # NOTE: the mask comes from JAX's threefry stream, not torch's RNG; the
    # dropout *semantics* (probability + 1/(1-p) scaling) are identical.
    pe = pe_ref[...]
    if batch > 1:
        pe = jnp.concatenate([pe] * batch, axis=-1)
    y = x_ref[...] + pe
    keep = bits_ref[...] >= jnp.uint32(keep_threshold)
    o_ref[...] = jnp.where(keep, y * jnp.asarray(scale, y.dtype),
                           jnp.zeros_like(y)).astype(o_ref.dtype)


# --------------------------------------------------------------------------
# Tiling helpers
# --------------------------------------------------------------------------
def _num_tensorcores():
    """2 on v7x (megacore-per-chip), else 1. Grid splitting is pure serial
    overhead on single-TC chips, so only split when it buys parallelism."""
    try:
        d = jax.devices()[0]
        if d.platform != "tpu":
            return 1
        kind = (getattr(d, "device_kind", "") or "").lower()
        return 2 if "v7" in kind else 1
    except Exception:
        return 1


def _pick_seq_tile(S, bytes_per_row, *, vmem_budget=24 << 20, num_cores=1):
    """Pick the sequence-tile size.

    bytes_per_row: total bytes per sequence position summed over all pipelined
    streams (x in, out, pe, optional dropout bits). We target the largest tile
    whose double-buffered footprint fits the VMEM budget, splitting the grid
    only when there is more than one TensorCore to feed.
    """
    ts = max(8, int(vmem_budget // (2 * max(bytes_per_row, 1))))
    if num_cores > 1 and S >= num_cores * 8:
        ts = min(ts, pl.cdiv(S, num_cores))
    ts = min(ts, S)
    if ts < S:
        # Partial tiles keep the sublane (second-to-last block) dim 8-aligned.
        ts = max(8, (ts // 8) * 8)
    return ts


# --------------------------------------------------------------------------
# Module-equivalent wrapper
# --------------------------------------------------------------------------
class PositionalEncoding:
    def __init__(self, d_model, dropout=0.1, max_len=5000):
        self.p = float(dropout)
        self.d_model = int(d_model)
        # Build the sinusoid table exactly as the PyTorch __init__ does.
        position = jnp.arange(0, max_len, dtype=jnp.float32)[:, None]            # (max_len, 1)
        div_term = jnp.exp(
            jnp.arange(0, d_model, 2, dtype=jnp.float32) * (-math.log(10000.0) / d_model)
        )
        pe = jnp.zeros((max_len, d_model), dtype=jnp.float32)
        pe = pe.at[:, 0::2].set(jnp.sin(position * div_term))
        pe = pe.at[:, 1::2].set(jnp.cos(position * div_term)[:, : d_model // 2])
        self._pe_table = pe                      # (max_len, d_model) used by the kernel
        self.pe = pe[:, None, :]                 # (max_len, 1, d_model) — torch buffer layout
        self._pe_cache = {}                      # (S, dtype) -> cast (S, d_model) slice

    def _pe_slice(self, S, dtype):
        key = (S, jnp.dtype(dtype).name)
        cached = self._pe_cache.get(key)
        if cached is None:
            cached = self._pe_table[:S].astype(dtype)
            self._pe_cache[key] = cached
        return cached

    def __call__(self, x, *, training=False, seed=0):
        # x: (S, B, D) seq-first, like the PyTorch module.
        S, B, D = x.shape
        assert D == self.d_model
        itemsize = jnp.dtype(x.dtype).itemsize

        if training and self.p >= 1.0:
            return jnp.zeros_like(x)
        use_dropout = training and self.p > 0.0

        pe_in = self._pe_slice(S, x.dtype)                                        # (S, D)
        x_in = x.reshape(S, B * D)                                                # free, contiguous

        # Per-sequence-position bytes across every pipelined stream.
        bytes_per_row = (2 * B * D + D) * itemsize
        if use_dropout:
            bytes_per_row += B * D * 4                                            # uint32 bits
        ts = _pick_seq_tile(S, bytes_per_row, num_cores=_num_tensorcores())
        grid = (pl.cdiv(S, ts),)

        x_spec = pl.BlockSpec((ts, B * D), lambda i: (i, 0))
        pe_spec = pl.BlockSpec((ts, D), lambda i: (i, 0))
        bits_spec = pl.BlockSpec((ts, B * D), lambda i: (i, 0))
        out_spec = pl.BlockSpec((ts, B * D), lambda i: (i, 0))
        out_shape = jax.ShapeDtypeStruct((S, B * D), x.dtype)

        cparams = pltpu.CompilerParams(
            dimension_semantics=("parallel",),
            vmem_limit_bytes=32 * 1024 * 1024,   # 24 MiB tile budget + headroom; safe on v5e/v6e/v7x
        )
        bytes_accessed = (2 * S * B * D + S * D) * itemsize
        if use_dropout:
            bytes_accessed += S * B * D * 4
        cost = pl.CostEstimate(flops=S * B * D, transcendentals=0, bytes_accessed=bytes_accessed)

        if not use_dropout:
            out = pl.pallas_call(
                functools.partial(_pe_add_kernel, batch=B),
                out_shape=out_shape,
                grid=grid,
                in_specs=[x_spec, pe_spec],
                out_specs=out_spec,
                compiler_params=cparams,
                cost_estimate=cost,
            )(x_in, pe_in)
        else:
            # keep_threshold clamp only matters for p -> 1.0 (keep prob collapses
            # toward 0 instead of 1-p); irrelevant for typical p = 0.1.
            keep_threshold = min(int(round(self.p * (1 << 32))), (1 << 32) - 1)
            scale = 1.0 / (1.0 - self.p)
            bits = jax.random.bits(jax.random.PRNGKey(seed), (S, B * D), dtype=jnp.uint32)
            out = pl.pallas_call(
                functools.partial(
                    _pe_add_dropout_kernel,
                    batch=B, keep_threshold=keep_threshold, scale=scale,
                ),
                out_shape=out_shape,
                grid=grid,
                in_specs=[x_spec, pe_spec, bits_spec],
                out_specs=out_spec,
                compiler_params=cparams,
                cost_estimate=cost,
            )(x_in, pe_in, bits)

        return out.reshape(S, B, D)


# --------------------------------------------------------------------------
# Main
# --------------------------------------------------------------------------
if __name__ == "__main__":
    key = jax.random.PRNGKey(0)

    # Case 1: lane-aligned d_model, small batch -> flattened (S, B*D) lane-dense path.
    S, B, D = 64, 2, 128
    x = jax.random.normal(key, (S, B, D), dtype=jnp.float32)
    mod = PositionalEncoding(d_model=D, dropout=0.1, max_len=5000)

    out_eval = jax.block_until_ready(mod(x, training=False))
    ref = x + mod.pe[:S].astype(x.dtype)
    assert out_eval.shape == (S, B, D)
    assert jnp.allclose(out_eval, ref, atol=1e-6, rtol=1e-6)

    out_train = jax.block_until_ready(mod(x, training=True, seed=123))
    scale = 1.0 / (1.0 - mod.p)
    ok = jnp.isclose(out_train, 0.0) | jnp.isclose(out_train, ref * scale, atol=1e-5, rtol=1e-5)
    assert out_train.shape == (S, B, D)
    assert bool(jnp.all(ok))
    drop_frac = float(jnp.mean((out_train == 0.0).astype(jnp.float32)))
    assert 0.02 < drop_frac < 0.25  # expect ~p = 0.1 dropped

    # Case 2: small, non-lane-aligned d_model (B*D = 64 lanes), like the original demo.
    S2, B2, D2 = 8, 2, 32
    x2 = jax.random.normal(jax.random.PRNGKey(1), (S2, B2, D2), dtype=jnp.float32)
    mod2 = PositionalEncoding(d_model=D2, dropout=0.1, max_len=5000)
    out2 = jax.block_until_ready(mod2(x2, training=False))
    ref2 = x2 + mod2.pe[:S2].astype(x2.dtype)
    assert out2.shape == (S2, B2, D2)
    assert jnp.allclose(out2, ref2, atol=1e-6, rtol=1e-6)

    print("KERNEL_OK")
</pallas_src>

<mosaic_0001>
module attributes {stable_mosaic.version = 11 : i64} {
  func.func @_pe_add_kernel(%arg0: i32, %arg1: memref<64x256xf32, #tpu.memory_space<vmem>>, %arg2: memref<64x128xf32, #tpu.memory_space<vmem>>, %arg3: memref<64x256xf32, #tpu.memory_space<vmem>>) attributes {dimension_semantics = [#tpu.dimension_semantics<parallel>], iteration_bounds = array<i64: 1>, scalar_prefetch = 0 : i64, scratch_operands = 0 : i64, tpu.core_type = #tpu.core_type<tc>, window_params = [{transform_indices = @transform_0, window_bounds = array<i64: 64, 256>}, {transform_indices = @transform_1, window_bounds = array<i64: 64, 128>}, {transform_indices = @transform_2, window_bounds = array<i64: 64, 256>}]} {
    %c0 = arith.constant 0 : index
    %c0_0 = arith.constant 0 : index
    %0 = vector.load %arg2[%c0, %c0_0] : memref<64x128xf32, #tpu.memory_space<vmem>>, vector<64x128xf32>
    %1 = tpu.concatenate %0, %0 in 1 : vector<64x128xf32>, vector<64x128xf32> -> vector<64x256xf32>
    %c0_1 = arith.constant 0 : index
    %c0_2 = arith.constant 0 : index
    %2 = vector.load %arg1[%c0_1, %c0_2] : memref<64x256xf32, #tpu.memory_space<vmem>>, vector<64x256xf32>
    %3 = arith.addf %2, %1 : vector<64x256xf32>
    %c0_3 = arith.constant 0 : index
    %c0_4 = arith.constant 0 : index
    %4 = vector.load %arg3[%c0_3, %c0_4] : memref<64x256xf32, #tpu.memory_space<vmem>>, vector<64x256xf32>
    tpu.vector_store %arg3[%c0_3, %c0_4], %3 {strides = array<i32>} : memref<64x256xf32, #tpu.memory_space<vmem>>, vector<64x256xf32>,
    return
  }
  func.func @transform_0(%arg0: i32) -> (i32, i32) {
    %c0_i32 = arith.constant 0 : i32
    %c0_i32_0 = arith.constant 0 : i32
    return %arg0, %c0_i32 : i32, i32
  }
  func.func @transform_1(%arg0: i32) -> (i32, i32) {
    %c0_i32 = arith.constant 0 : i32
    %c0_i32_0 = arith.constant 0 : i32
    return %arg0, %c0_i32 : i32, i32
  }
  func.func @transform_2(%arg0: i32) -> (i32, i32) {
    %c0_i32 = arith.constant 0 : i32
    %c0_i32_0 = arith.constant 0 : i32
    return %arg0, %c0_i32 : i32, i32
  }
}

</mosaic_0001>

<llo_original>
// kernel: tpu_custom_call.1
$region0: #{tpu_custom_call.1}
  #allocation0 [shape = 'u32[]', space=smem, size = 0x4, offset = 0x4, fixed_abs, tag = 'smem constant byte address 0x4 - core index']
  #allocation1 [shape = 'u32[144,128]{1,0:T(1,128)}', space=vmem, size = 0x12000, scoped, tag = 'internal scratch']
  %s0 = inlined_call_operand.hbm [shape: f32[64,256], index: 0, kind: input, shape index: {}]
  %s1 = inlined_call_operand.hbm [shape: f32[64,128], index: 1, kind: input, shape index: {}]
  %s2 = inlined_call_operand.hbm [shape: f32[64,256], index: 2, kind: output, shape index: {}]
  %s3 = sld [smem:[#allocation0]]
  $region26: #{tpu_custom_call.1} parent=0
    _
  %s5 = ssub.s32 1, %s3
  %s6 = scalar_select 0, %s5, %s3
  $region1: #{tpu_custom_call.1} parent=0
    #allocation2 [shape = 'u8[65536]{0}', space=vmem, size = 0x10000, scoped, tag = 'input window, operand 0, single buffered']
    #allocation3 [shape = 's32[1]{0}', space=sflag, size = 0x4, scoped, tag = 'scoped memory for tpu_custom_call.1']
    #allocation4 [shape = 's32[1]{0}', space=sflag, size = 0x4, scoped, tag = 'scoped memory for tpu_custom_call.1']
    #allocation5 [shape = 'u8[32768]{0}', space=vmem, size = 0x8000, scoped, tag = 'input window, operand 1, single buffered']
    #allocation6 [shape = 's32[1]{0}', space=sflag, size = 0x4, scoped, tag = 'scoped memory for tpu_custom_call.1']
    #allocation7 [shape = 'u8[65536]{0}', space=vmem, size = 0x10000, scoped, tag = 'output window, operand 0, single buffered']
    %7 = vsyncpa [#allocation3], 0
    %8 = vsyncpa [#allocation6], 0
    %9 = vsyncpa [#allocation4], 0
    // Predicated region
    $region2: #{tpu_custom_call.1} parent=1 // pred_check
      _
    $region3: #{tpu_custom_call.1} parent=1 // pred_check_branch
      %11 = sbr.rel (0) target = $region5
    $region4: #{tpu_custom_call.1} parent=1 // pred_region
      %s13 = ssub.s32 2048, 2048
      %14 = vsyncadd [#allocation3], %s13
      %s15 = sshll.u32 [#allocation2], 4
      %s16 = int_to_ptr.vmem [resolvable:$true] %s15
      %21 = dma.hbm_to_vmem [thread:$0]  %s0, 2048, %s16, [#allocation3], 256, 256, 16
    $region5: #{tpu_custom_call.1} parent=1 // pred_fallthru
      _
    // Predicated region
    $region6: #{tpu_custom_call.1} parent=1 // pred_check
      _
    $region7: #{tpu_custom_call.1} parent=1 // pred_check_branch
      %23 = sbr.rel (0) target = $region9
    $region8: #{tpu_custom_call.1} parent=1 // pred_region
      %s25 = ssub.s32 1024, 1024
      %26 = vsyncadd [#allocation6], %s25
      %s27 = sshll.u32 [#allocation5], 4
      %s28 = int_to_ptr.vmem [resolvable:$true] %s27
      %33 = dma.hbm_to_vmem [thread:$0]  %s1, 1024, %s28, [#allocation6], 128, 128, 8
    $region9: #{tpu_custom_call.1} parent=1 // pred_fallthru
      _
    // Predicated region
    $region10: #{tpu_custom_call.1} parent=1 // pred_check
      _
    $region11: #{tpu_custom_call.1} parent=1 // pred_check_branch
      %35 = sbr.rel (0) target = $region13
    $region12: #{tpu_custom_call.1} parent=1 // pred_region
      %36 = dma.done [#allocation3], 2048
    $region13: #{tpu_custom_call.1} parent=1 // pred_fallthru
      _
    // Predicated region
    $region14: #{tpu_custom_call.1} parent=1 // pred_check
      _
    $region15: #{tpu_custom_call.1} parent=1 // pred_check_branch
      %38 = sbr.rel (0) target = $region17
    $region16: #{tpu_custom_call.1} parent=1 // pred_region
      %39 = dma.done [#allocation6], 1024
    $region17: #{tpu_custom_call.1} parent=1 // pred_fallthru
      _
    %v40 = vld [vmem:[#allocation5] sm:$0xff]
    %v41 = vld [vmem:[#allocation5 + $0x8] sm:$0xff]
    %v42 = vld [vmem:[#allocation5 + $0x10] sm:$0xff]
    %v43 = vld [vmem:[#allocation5 + $0x18] sm:$0xff]
    %v44 = vld [vmem:[#allocation5 + $0x20] sm:$0xff]
    %v45 = vld [vmem:[#allocation5 + $0x28] sm:$0xff]
    %v46 = vld [vmem:[#allocation5 + $0x30] sm:$0xff]
    %v47 = vld [vmem:[#allocation5 + $0x38] sm:$0xff]
    %v48 = vld [vmem:[#allocation2] sm:$0xff]
    %v49 = vld [vmem:[#allocation2 + $0x8] sm:$0xff]
    %v50 = vld [vmem:[#allocation2 + $0x10] sm:$0xff]
    %v51 = vld [vmem:[#allocation2 + $0x18] sm:$0xff]
    %v52 = vld [vmem:[#allocation2 + $0x20] sm:$0xff]
    %v53 = vld [vmem:[#allocation2 + $0x28] sm:$0xff]
    %v54 = vld [vmem:[#allocation2 + $0x30] sm:$0xff]
    %v55 = vld [vmem:[#allocation2 + $0x38] sm:$0xff]
    %v56 = vld [vmem:[#allocation2 + $0x40] sm:$0xff]
    %v57 = vld [vmem:[#allocation2 + $0x48] sm:$0xff]
    %v58 = vld [vmem:[#allocation2 + $0x50] sm:$0xff]
    %v59 = vld [vmem:[#allocation2 + $0x58] sm:$0xff]
    %v60 = vld [vmem:[#allocation2 + $0x60] sm:$0xff]
    %v61 = vld [vmem:[#allocation2 + $0x68] sm:$0xff]
    %v62 = vld [vmem:[#allocation2 + $0x70] sm:$0xff]
    %v63 = vld [vmem:[#allocation2 + $0x78] sm:$0xff]
    %v64 = vadd.f32 %v48, %v40
    %v65 = vadd.f32 %v49, %v40
    %v66 = vadd.f32 %v50, %v41
    %v67 = vadd.f32 %v51, %v41
    %v68 = vadd.f32 %v52, %v42
    %v69 = vadd.f32 %v53, %v42
    %v70 = vadd.f32 %v54, %v43
    %v71 = vadd.f32 %v55, %v43
    %v72 = vadd.f32 %v56, %v44
    %v73 = vadd.f32 %v57, %v44
    %v74 = vadd.f32 %v58, %v45
    %v75 = vadd.f32 %v59, %v45
    %v76 = vadd.f32 %v60, %v46
    %v77 = vadd.f32 %v61, %v46
    %v78 = vadd.f32 %v62, %v47
    %v79 = vadd.f32 %v63, %v47
    %80 = vst [vmem:[#allocation7] sm:$0xff] %v64
    %81 = vst [vmem:[#allocation7 + $0x8] sm:$0xff] %v65
    %82 = vst [vmem:[#allocation7 + $0x10] sm:$0xff] %v66
    %83 = vst [vmem:[#allocation7 + $0x18] sm:$0xff] %v67
    %84 = vst [vmem:[#allocation7 + $0x20] sm:$0xff] %v68
    %85 = vst [vmem:[#allocation7 + $0x28] sm:$0xff] %v69
    %86 = vst [vmem:[#allocation7 + $0x30] sm:$0xff] %v70
    %87 = vst [vmem:[#allocation7 + $0x38] sm:$0xff] %v71
    %88 = vst [vmem:[#allocation7 + $0x40] sm:$0xff] %v72
    %89 = vst [vmem:[#allocation7 + $0x48] sm:$0xff] %v73
    %90 = vst [vmem:[#allocation7 + $0x50] sm:$0xff] %v74
    %91 = vst [vmem:[#allocation7 + $0x58] sm:$0xff] %v75
    %92 = vst [vmem:[#allocation7 + $0x60] sm:$0xff] %v76
    %93 = vst [vmem:[#allocation7 + $0x68] sm:$0xff] %v77
    %94 = vst [vmem:[#allocation7 + $0x70] sm:$0xff] %v78
    %95 = vst [vmem:[#allocation7 + $0x78] sm:$0xff] %v79
    // Predicated region
    $region18: #{tpu_custom_call.1} parent=1 // pred_check
      _
    $region19: #{tpu_custom_call.1} parent=1 // pred_check_branch
      %97 = sbr.rel (0) target = $region21
    $region20: #{tpu_custom_call.1} parent=1 // pred_region
      %s99 = ssub.s32 2048, 2048
      %100 = vsyncadd [#allocation4], %s99
      %s101 = sshll.u32 [#allocation7], 4
      %s102 = int_to_ptr.vmem [resolvable:$true] %s101
      %107 = dma.vmem_to_hbm [thread:$0]  %s102, 2048, %s2, [#allocation4], 256, 256, 16
    $region21: #{tpu_custom_call.1} parent=1 // pred_fallthru
      _
    // Predicated region
    $region22: #{tpu_custom_call.1} parent=1 // pred_check
      _
    $region23: #{tpu_custom_call.1} parent=1 // pred_check_branch
      %109 = sbr.rel (0) target = $region25
    $region24: #{tpu_custom_call.1} parent=1 // pred_region
      %110 = dma.done [#allocation4], 2048
    $region25: #{tpu_custom_call.1} parent=1 // pred_fallthru
      _
    %111 = vsyncpa [#allocation3], 1
    %112 = vsyncpa [#allocation6], 1
    %113 = vsyncpa [#allocation4], 1

</llo_original>
